<compile_context>
chip_gen: v6e
topology: v6e:2x2x1
jax: 0.10.0
libtpu: 0.0.40
codegen_flags: <defaults>
</compile_context>

<pallas_src>
import functools

import jax
import jax.numpy as jnp
from jax import lax
from jax.experimental import pallas as pl
from jax.experimental.pallas import tpu as pltpu

_LANE = 128
_SUBLANE = 8


def _round_up(a, b):
    return ((a + b - 1) // b) * b


def _row_multiple(dtype) -> int:
    # Sublane packing: f32 -> 8 rows/vreg, bf16 -> 16, int8/fp8 -> 32.
    itemsize = jnp.dtype(dtype).itemsize
    return max(_SUBLANE, (_SUBLANE * 4) // itemsize)


def _angle_loss_kernel(x_ref, y_ref, a_ref, w_ref, out_ref, *, chunk_rows):
    tile_rows = x_ref.shape[0]
    n_chunks = tile_rows // chunk_rows

    def body(i, acc):
        r0 = pl.multiple_of(i * chunk_rows, chunk_rows)
        sl = pl.ds(r0, chunk_rows)
        # Upcast in-register; inputs stay in their native dtype in HBM/VMEM.
        x = x_ref[sl, :].astype(jnp.float32)
        y = y_ref[sl, :].astype(jnp.float32)
        a = a_ref[sl, :].astype(jnp.float32)
        w = w_ref[sl, :].astype(jnp.float32)
        # Elementwise hot path: weight * (|x - cos(a)| + |y - sin(a)|).
        loss = w * (jnp.abs(x - jnp.cos(a)) + jnp.abs(y - jnp.sin(a)))
        if chunk_rows > _SUBLANE:
            # vreg-aligned fold of sublane groups -> plain vector adds.
            loss = loss.reshape(chunk_rows // _SUBLANE, _SUBLANE, _LANE).sum(axis=0)
        return acc + loss

    # Short loops: fully unroll. Long loops: unroll a divisor of the trip count
    # so the LLO scheduler can overlap iterations without a remainder path.
    if n_chunks <= 8:
        unroll = max(n_chunks, 1)
    elif n_chunks % 8 == 0:
        unroll = 8
    elif n_chunks % 4 == 0:
        unroll = 4
    elif n_chunks % 2 == 0:
        unroll = 2
    else:
        unroll = 1

    acc = lax.fori_loop(
        0, n_chunks, body, jnp.zeros((_SUBLANE, _LANE), jnp.float32), unroll=unroll
    )
    out_ref[...] = acc[None]  # (1, 8, 128) per-block partial sum


def angle_loss(x, y, angle, weight, *, target_tile_rows=4096):
    """Compute mean(weight * (|x - cos(angle)| + |y - sin(angle)|)) as f32."""
    assert x.shape == y.shape == angle.shape == weight.shape
    n_elem = x.size
    assert n_elem > 0

    row_mult = max(_row_multiple(a.dtype) for a in (x, y, angle, weight))
    chunk_rows = row_mult  # one packed vreg of rows per inner-loop step

    m = pl.cdiv(n_elem, _LANE)  # rows of the lane-dense slab (before padding)

    # Block count: big enough to amortize per-step overhead (~target_tile_rows
    # rows/step), but >= 2 (and even) whenever possible so the "parallel" axis
    # can shard evenly across v7x's two TensorCores.
    num_blocks = max(1, pl.cdiv(m, target_tile_rows))
    if m > row_mult:
        num_blocks = max(num_blocks, 2)
    if num_blocks > 1 and num_blocks % 2:
        num_blocks += 1
    tile_rows = _round_up(pl.cdiv(m, num_blocks), row_mult)
    m_padded = tile_rows * num_blocks
    pad = m_padded * _LANE - n_elem

    def prep(arr):
        flat = arr.reshape(-1)
        if pad:
            flat = jnp.pad(flat, (0, pad))  # zeros; zero weight kills padding
        return flat.reshape(m_padded, _LANE)

    xs, ys, an, ws = prep(x), prep(y), prep(angle), prep(weight)

    # Explicit scoped-VMEM budget: double-buffered inputs + generous headroom,
    # kept under v7x's 64 MiB physical VMEM (v5e/v6e have 128 MiB physical).
    in_bytes_per_row = _LANE * sum(
        jnp.dtype(a.dtype).itemsize for a in (xs, ys, an, ws)
    )
    in_buffer_bytes = 2 * tile_rows * in_bytes_per_row  # 2-deep pipelining
    vmem_limit = int(min(48 << 20, max(32 << 20, 2 * in_buffer_bytes)))

    tile_spec = pl.BlockSpec((tile_rows, _LANE), lambda i: (i, 0))

    partials = pl.pallas_call(
        functools.partial(_angle_loss_kernel, chunk_rows=chunk_rows),
        out_shape=jax.ShapeDtypeStruct((num_blocks, _SUBLANE, _LANE), jnp.float32),
        grid_spec=pltpu.PrefetchScalarGridSpec(
            num_scalar_prefetch=0,
            grid=(num_blocks,),
            in_specs=[tile_spec, tile_spec, tile_spec, tile_spec],
            out_specs=pl.BlockSpec((1, _SUBLANE, _LANE), lambda i: (i, 0, 0)),
        ),
        compiler_params=pltpu.CompilerParams(
            dimension_semantics=("parallel",),
            vmem_limit_bytes=vmem_limit,
        ),
    )(xs, ys, an, ws)

    # Final cross-lane reduce + mean normalization: one tiny wrapper op.
    # (For N >~ 1e8 consider a pairwise/two-stage final sum for f32 drift.)
    return jnp.sum(partials) / jnp.float32(n_elem)


if __name__ == "__main__":
    # Deterministic parameter + input construction (synthetic, no checkpoint).
    B, C, H, W = 2, 4, 16, 16
    gamma = 1.0

    key = jax.random.PRNGKey(0)
    k_w, k_x, k_y, k_a = jax.random.split(key, 4)

    # Module __init__: self.weight = |weight| ** gamma
    w0 = jax.random.normal(k_w, (B, C, H, W), dtype=jnp.float32)
    weight = jnp.abs(w0) ** gamma

    x = jax.random.normal(k_x, (B, C, H, W), dtype=jnp.float32)
    y = jax.random.normal(k_y, (B, C, H, W), dtype=jnp.float32)
    angle = jax.random.uniform(
        k_a, (B, C, H, W), dtype=jnp.float32, minval=-3.14159, maxval=3.14159
    )

    out = angle_loss(x, y, angle, weight)
    out = jax.block_until_ready(out)

    # Reference check in plain JAX (same math as the PyTorch forward).
    ref = jnp.mean(weight * (jnp.abs(x - jnp.cos(angle)) + jnp.abs(y - jnp.sin(angle))))
    assert jnp.allclose(out, ref, rtol=1e-5, atol=1e-5), (out, ref)

    print("KERNEL_OK")
</pallas_src>

<mosaic_0001>
module attributes {stable_mosaic.version = 11 : i64} {
  func.func @_angle_loss_kernel(%arg0: i32, %arg1: memref<8x128xf32, #tpu.memory_space<vmem>>, %arg2: memref<8x128xf32, #tpu.memory_space<vmem>>, %arg3: memref<8x128xf32, #tpu.memory_space<vmem>>, %arg4: memref<8x128xf32, #tpu.memory_space<vmem>>, %arg5: memref<1x8x128xf32, #tpu.memory_space<vmem>>) attributes {dimension_semantics = [#tpu.dimension_semantics<parallel>], iteration_bounds = array<i64: 2>, scalar_prefetch = 0 : i64, scratch_operands = 0 : i64, tpu.core_type = #tpu.core_type<tc>, window_params = [{transform_indices = @transform_0, window_bounds = array<i64: 8, 128>}, {transform_indices = @transform_1, window_bounds = array<i64: 8, 128>}, {transform_indices = @transform_2, window_bounds = array<i64: 8, 128>}, {transform_indices = @transform_3, window_bounds = array<i64: 8, 128>}, {transform_indices = @transform_4, window_bounds = array<i64: 1, 8, 128>}]} {
    %cst = arith.constant 0.000000e+00 : f32
    %0 = vector.broadcast %cst : f32 to vector<8x128xf32>
    %c0_i32 = arith.constant 0 : i32
    %c8_i32 = arith.constant 8 : i32
    %1 = arith.muli %c0_i32, %c8_i32 : i32
    %2 = tpu.assume_multiple %1, 8 : i32
    %3 = arith.index_cast %2 : i32 to index
    %c0 = arith.constant 0 : index
    %4 = vector.load %arg1[%3, %c0] : memref<8x128xf32, #tpu.memory_space<vmem>>, vector<8x128xf32>
    %5 = arith.index_cast %2 : i32 to index
    %c0_0 = arith.constant 0 : index
    %6 = vector.load %arg2[%5, %c0_0] : memref<8x128xf32, #tpu.memory_space<vmem>>, vector<8x128xf32>
    %7 = arith.index_cast %2 : i32 to index
    %c0_1 = arith.constant 0 : index
    %8 = vector.load %arg3[%7, %c0_1] : memref<8x128xf32, #tpu.memory_space<vmem>>, vector<8x128xf32>
    %9 = arith.index_cast %2 : i32 to index
    %c0_2 = arith.constant 0 : index
    %10 = vector.load %arg4[%9, %c0_2] : memref<8x128xf32, #tpu.memory_space<vmem>>, vector<8x128xf32>
    %11 = math.cos %8 : vector<8x128xf32>
    %12 = arith.subf %4, %11 : vector<8x128xf32>
    %13 = math.absf %12 : vector<8x128xf32>
    %14 = math.sin %8 : vector<8x128xf32>
    %15 = arith.subf %6, %14 : vector<8x128xf32>
    %16 = math.absf %15 : vector<8x128xf32>
    %17 = arith.addf %13, %16 : vector<8x128xf32>
    %18 = arith.mulf %10, %17 : vector<8x128xf32>
    %19 = arith.addf %0, %18 : vector<8x128xf32>
    %c1_i32 = arith.constant 1 : i32
    %20 = vector.shape_cast %19 : vector<8x128xf32> to vector<1x8x128xf32>
    %c0_3 = arith.constant 0 : index
    %c0_4 = arith.constant 0 : index
    %c0_5 = arith.constant 0 : index
    %21 = vector.load %arg5[%c0_3, %c0_4, %c0_5] : memref<1x8x128xf32, #tpu.memory_space<vmem>>, vector<1x8x128xf32>
    tpu.vector_store %arg5[%c0_3, %c0_4, %c0_5], %20 {strides = array<i32>} : memref<1x8x128xf32, #tpu.memory_space<vmem>>, vector<1x8x128xf32>,
    return
  }
  func.func @transform_0(%arg0: i32) -> (i32, i32) {
    %c0_i32 = arith.constant 0 : i32
    %c0_i32_0 = arith.constant 0 : i32
    return %arg0, %c0_i32 : i32, i32
  }
  func.func @transform_1(%arg0: i32) -> (i32, i32) {
    %c0_i32 = arith.constant 0 : i32
    %c0_i32_0 = arith.constant 0 : i32
    return %arg0, %c0_i32 : i32, i32
  }
  func.func @transform_2(%arg0: i32) -> (i32, i32) {
    %c0_i32 = arith.constant 0 : i32
    %c0_i32_0 = arith.constant 0 : i32
    return %arg0, %c0_i32 : i32, i32
  }
  func.func @transform_3(%arg0: i32) -> (i32, i32) {
    %c0_i32 = arith.constant 0 : i32
    %c0_i32_0 = arith.constant 0 : i32
    return %arg0, %c0_i32 : i32, i32
  }
  func.func @transform_4(%arg0: i32) -> (i32, i32, i32) {
    %c0_i32 = arith.constant 0 : i32
    %c0_i32_0 = arith.constant 0 : i32
    %c0_i32_1 = arith.constant 0 : i32
    return %arg0, %c0_i32, %c0_i32_0 : i32, i32, i32
  }
}

</mosaic_0001>

<llo_original>
// kernel: tpu_custom_call.1
$region0: #{tpu_custom_call.1}
  #allocation0 [shape = 'u32[]', space=smem, size = 0x4, offset = 0x4, fixed_abs, tag = 'smem constant byte address 0x4 - core index']
  #allocation1 [shape = 'u32[144,128]{1,0:T(1,128)}', space=vmem, size = 0x12000, scoped, tag = 'internal scratch']
  %s0 = inlined_call_operand.hbm [shape: f32[16,128], index: 0, kind: input, shape index: {}]
  %s1 = inlined_call_operand.hbm [shape: f32[16,128], index: 1, kind: input, shape index: {}]
  %s2 = inlined_call_operand.hbm [shape: f32[16,128], index: 2, kind: input, shape index: {}]
  %s3 = inlined_call_operand.hbm [shape: f32[16,128], index: 3, kind: input, shape index: {}]
  %s4 = inlined_call_operand.hbm [shape: f32[2,8,128], index: 4, kind: output, shape index: {}]
  %s5 = sld [smem:[#allocation0]]
  $region65: #{tpu_custom_call.1} parent=0
    _
  %s7 = ssub.s32 1, %s5
  %s8 = scalar_select 0, %s7, %s5
  $region1: #{tpu_custom_call.1} parent=0
    #allocation2 [shape = 'u8[8192]{0}', space=vmem, size = 0x2000, scoped, tag = 'input window, operand 0']
    #allocation3 [shape = 's32[2]{0}', space=sflag, size = 0x8, scoped, tag = 'scoped memory for tpu_custom_call.1']
    #allocation4 [shape = 's32[2]{0}', space=sflag, size = 0x8, scoped, tag = 'scoped memory for tpu_custom_call.1']
    #allocation5 [shape = 'u8[8192]{0}', space=vmem, size = 0x2000, scoped, tag = 'input window, operand 1']
    #allocation6 [shape = 's32[2]{0}', space=sflag, size = 0x8, scoped, tag = 'scoped memory for tpu_custom_call.1']
    #allocation7 [shape = 'u8[8192]{0}', space=vmem, size = 0x2000, scoped, tag = 'input window, operand 2']
    #allocation8 [shape = 'u8[8192]{0}', space=vmem, size = 0x2000, scoped, tag = 'input window, operand 3']
    #allocation9 [shape = 's32[2]{0}', space=sflag, size = 0x8, scoped, tag = 'scoped memory for tpu_custom_call.1']
    #allocation10 [shape = 'u8[8192]{0}', space=vmem, size = 0x2000, scoped, tag = 'output window, operand 0']
    %9 = vsyncpa [#allocation3], 0
    %s10 = scalar_lea.sflag [#allocation3], 1
    %11 = vsyncpa %s10, 0
    %12 = vsyncpa [#allocation6], 0
    %s13 = scalar_lea.sflag [#allocation6], 1
    %14 = vsyncpa %s13, 0
    %15 = vsyncpa [#allocation9], 0
    %s16 = scalar_lea.sflag [#allocation9], 1
    %17 = vsyncpa %s16, 0
    %18 = vsyncpa [#allocation4], 0
    %s19 = scalar_lea.sflag [#allocation4], 1
    %20 = vsyncpa %s19, 0
    loop: start=0, step=1, limit=4
    $region2: #{tpu_custom_call.1} parent=1 // loop_pre_header
      _
    $region3: #{tpu_custom_call.1} parent=1 // loop_header
      %s22 = sphi 0, %s26
      %p23 = scmp.ge.s32.totalorder %s22, 4
      %s32 = sphi 0, %s34
      %s35 = sphi 0, %s32
      %s36 = sphi 0, %s35
      %s52 = sphi 0, %s36
      %s58 = sphi 0, %s60
      %s61 = sphi 0, %s58
      %s62 = sphi 0, %s61
      %s78 = sphi 0, %s62
      %s84 = sphi 0, %s86
      %s87 = sphi 0, %s84
      %s88 = sphi 0, %s87
      %s104 = sphi 0, %s88
      %s110 = sphi 0, %s112
      %s113 = sphi 0, %s110
      %s114 = sphi 0, %s113
      %s130 = sphi 0, %s114
      %s136 = sphi 0, %s138
      %s139 = sphi 0, %s136
      %s140 = sphi 0, %s139
      %s156 = sphi 0, %s140
    $region4: #{tpu_custom_call.1} parent=1 // loop_header_branch
      %25 = sbr.rel (%p23) target = $region8
    $region5: #{tpu_custom_call.1} parent=1 // loop_body
      %s27 = ssub.s32 %s22, 1
      %s28 = ssub.s32 %s22, 2
      %s29 = sadd.s32 %s22, 1
      %s30 = ssub.s32 %s22, %s29
      %p31 = scmp.eq.s32.totalorder %s30, 0
      %s33 = sadd.s32 %s32, 1
      %s34 = scalar_select %p31, %s32, %s33
      %p37 = pneg %p31
      %p38 = scmp.eq.s32.totalorder %s22, 1
      %p39 = por %p37, %p38
      %p40 = scmp.ne.s32.totalorder %s32, %s35
      %p41 = scmp.eq.s32.totalorder %s22, 0
      %p42 = por %p40, %p41
      %p43 = scmp.ne.s32.totalorder %s32, %s35
      %p44 = scmp.eq.s32.totalorder %s27, 1
      %p45 = por %p43, %p44
      %p46 = scmp.ne.s32.totalorder %s35, %s36
      %p47 = scmp.eq.s32.totalorder %s27, 0
      %p48 = por %p46, %p47
      %p49 = scmp.ne.s32.totalorder %s35, %s36
      %p50 = scmp.eq.s32.totalorder %s28, 1
      %p51 = por %p49, %p50
      %p53 = scmp.ne.s32.totalorder %s36, %s52
      %p54 = scmp.eq.s32.totalorder %s28, 0
      %p55 = por %p53, %p54
      %s56 = ssub.s32 %s22, %s29
      %p57 = scmp.eq.s32.totalorder %s56, 0
      %s59 = sadd.s32 %s58, 1
      %s60 = scalar_select %p57, %s58, %s59
      %p63 = pneg %p57
      %p64 = scmp.eq.s32.totalorder %s22, 1
      %p65 = por %p63, %p64
      %p66 = scmp.ne.s32.totalorder %s58, %s61
      %p67 = scmp.eq.s32.totalorder %s22, 0
      %p68 = por %p66, %p67
      %p69 = scmp.ne.s32.totalorder %s58, %s61
      %p70 = scmp.eq.s32.totalorder %s27, 1
      %p71 = por %p69, %p70
      %p72 = scmp.ne.s32.totalorder %s61, %s62
      %p73 = scmp.eq.s32.totalorder %s27, 0
      %p74 = por %p72, %p73
      %p75 = scmp.ne.s32.totalorder %s61, %s62
      %p76 = scmp.eq.s32.totalorder %s28, 1
      %p77 = por %p75, %p76
      %p79 = scmp.ne.s32.totalorder %s62, %s78
      %p80 = scmp.eq.s32.totalorder %s28, 0
      %p81 = por %p79, %p80
      %s82 = ssub.s32 %s22, %s29
      %p83 = scmp.eq.s32.totalorder %s82, 0
      %s85 = sadd.s32 %s84, 1
      %s86 = scalar_select %p83, %s84, %s85
      %p89 = pneg %p83
      %p90 = scmp.eq.s32.totalorder %s22, 1
      %p91 = por %p89, %p90
      %p92 = scmp.ne.s32.totalorder %s84, %s87
      %p93 = scmp.eq.s32.totalorder %s22, 0
      %p94 = por %p92, %p93
      %p95 = scmp.ne.s32.totalorder %s84, %s87
      %p96 = scmp.eq.s32.totalorder %s27, 1
      %p97 = por %p95, %p96
      %p98 = scmp.ne.s32.totalorder %s87, %s88
      %p99 = scmp.eq.s32.totalorder %s27, 0
      %p100 = por %p98, %p99
      %p101 = scmp.ne.s32.totalorder %s87, %s88
      %p102 = scmp.eq.s32.totalorder %s28, 1
      %p103 = por %p101, %p102
      %p105 = scmp.ne.s32.totalorder %s88, %s104
      %p106 = scmp.eq.s32.totalorder %s28, 0
      %p107 = por %p105, %p106
      %s108 = ssub.s32 %s22, %s29
      %p109 = scmp.eq.s32.totalorder %s108, 0
      %s111 = sadd.s32 %s110, 1
      %s112 = scalar_select %p109, %s110, %s111
      %p115 = pneg %p109
      %p116 = scmp.eq.s32.totalorder %s22, 1
      %p117 = por %p115, %p116
      %p118 = scmp.ne.s32.totalorder %s110, %s113
      %p119 = scmp.eq.s32.totalorder %s22, 0
      %p120 = por %p118, %p119
      %p121 = scmp.ne.s32.totalorder %s110, %s113
      %p122 = scmp.eq.s32.totalorder %s27, 1
      %p123 = por %p121, %p122
      %p124 = scmp.ne.s32.totalorder %s113, %s114
      %p125 = scmp.eq.s32.totalorder %s27, 0
      %p126 = por %p124, %p125
      %p127 = scmp.ne.s32.totalorder %s113, %s114
      %p128 = scmp.eq.s32.totalorder %s28, 1
      %p129 = por %p127, %p128
      %p131 = scmp.ne.s32.totalorder %s114, %s130
      %p132 = scmp.eq.s32.totalorder %s28, 0
      %p133 = por %p131, %p132
      %s134 = ssub.s32 %s22, %s29
      %p135 = scmp.eq.s32.totalorder %s134, 0
      %s137 = sadd.s32 %s136, 1
      %s138 = scalar_select %p135, %s136, %s137
      %p141 = pneg %p135
      %p142 = scmp.eq.s32.totalorder %s22, 1
      %p143 = por %p141, %p142
      %p144 = scmp.ne.s32.totalorder %s136, %s139
      %p145 = scmp.eq.s32.totalorder %s22, 0
      %p146 = por %p144, %p145
      %p147 = scmp.ne.s32.totalorder %s136, %s139
      %p148 = scmp.eq.s32.totalorder %s27, 1
      %p149 = por %p147, %p148
      %p150 = scmp.ne.s32.totalorder %s139, %s140
      %p151 = scmp.eq.s32.totalorder %s27, 0
      %p152 = por %p150, %p151
      %p153 = scmp.ne.s32.totalorder %s139, %s140
      %p154 = scmp.eq.s32.totalorder %s28, 1
      %p155 = por %p153, %p154
      %p157 = scmp.ne.s32.totalorder %s140, %s156
      %p158 = scmp.eq.s32.totalorder %s28, 0
      %p159 = por %p157, %p158
      %p160 = scmp.le.s32.totalorder 1, %s22
      %p161 = scmp.lt.s32.totalorder %s22, 3
      %p162 = pnand %p160, %p161
      %p163 = pneg %p162
      // Predicated region
      $region9: #{tpu_custom_call.1} parent=5 // pred_check
        _
      $region10: #{tpu_custom_call.1} parent=5 // pred_check_branch
        %165 = sbr.rel (%p162) target = $region12
      $region11: #{tpu_custom_call.1} parent=5 // pred_region
        %s166 = ssub.s32 %s22, 1
      $region12: #{tpu_custom_call.1} parent=5 // pred_fallthru
        _
      %p167 = scmp.lt.s32.totalorder %s22, 2
      // Predicated region
      $region13: #{tpu_custom_call.1} parent=5 // pred_check
        %p168 = pneg %p167
      $region14: #{tpu_custom_call.1} parent=5 // pred_check_branch
        %170 = sbr.rel (%p168) target = $region16
      $region15: #{tpu_custom_call.1} parent=5 // pred_region
        // Predicated region
        $region17: #{tpu_custom_call.1} parent=15 // pred_check
          %p171 = pneg %p42
        $region18: #{tpu_custom_call.1} parent=15 // pred_check_branch
          %173 = sbr.rel (%p171) target = $region20
        $region19: #{tpu_custom_call.1} parent=15 // pred_region
          %s174 = sand.u32 %s32, 1
          %s175 = scalar_lea.sflag [#allocation3], %s174
          %s176 = sand.u32 %s32, 1
          %s177 = smul.addr %s176, 8
          %s178 = scalar_lea.vmem [#allocation2], %s177
          %s180 = ssub.s32 128, 128
          %181 = vsyncadd %s175, %s180
          %s182 = smul.addr %s22, 128
          %s183 = scalar_lea.hbm %s0, %s182
          %s185 = sshll.u32 %s178, 4
          %s186 = int_to_ptr.vmem [resolvable:$true] %s185
          %188 = dma.hbm_to_vmem [thread:$0]  %s183, 128, %s186, %s175
        $region20: #{tpu_custom_call.1} parent=15 // pred_fallthru
          _
        // Predicated region
        $region21: #{tpu_custom_call.1} parent=15 // pred_check
          %p189 = pneg %p68
        $region22: #{tpu_custom_call.1} parent=15 // pred_check_branch
          %191 = sbr.rel (%p189) target = $region24
        $region23: #{tpu_custom_call.1} parent=15 // pred_region
          %s192 = sand.u32 %s22, 1
          %s193 = scalar_lea.sflag [#allocation6], %s192
          %s194 = sand.u32 %s58, 1
          %s195 = smul.addr %s194, 8
          %s196 = scalar_lea.vmem [#allocation5], %s195
          %s198 = ssub.s32 128, 128
          %199 = vsyncadd %s193, %s198
          %s200 = smul.addr %s22, 128
          %s201 = scalar_lea.hbm %s1, %s200
          %s203 = sshll.u32 %s196, 4
          %s204 = int_to_ptr.vmem [resolvable:$true] %s203
          %206 = dma.hbm_to_vmem [thread:$0]  %s201, 128, %s204, %s193
        $region24: #{tpu_custom_call.1} parent=15 // pred_fallthru
          _
        // Predicated region
        $region25: #{tpu_custom_call.1} parent=15 // pred_check
          %p207 = pneg %p94
        $region26: #{tpu_custom_call.1} parent=15 // pred_check_branch
          %209 = sbr.rel (%p207) target = $region28
        $region27: #{tpu_custom_call.1} parent=15 // pred_region
          %s210 = sand.u32 %s22, 1
          %s211 = scalar_lea.sflag [#allocation6], %s210
          %s212 = sand.u32 %s84, 1
          %s213 = smul.addr %s212, 8
          %s214 = scalar_lea.vmem [#allocation7], %s213
          %s216 = ssub.s32 128, 128
          %217 = vsyncadd %s211, %s216
          %s218 = smul.addr %s22, 128
          %s219 = scalar_lea.hbm %s2, %s218
          %s221 = sshll.u32 %s214, 4
          %s222 = int_to_ptr.vmem [resolvable:$true] %s221
          %224 = dma.hbm_to_vmem [thread:$0]  %s219, 128, %s222, %s211
        $region28: #{tpu_custom_call.1} parent=15 // pred_fallthru
          _
        // Predicated region
        $region29: #{tpu_custom_call.1} parent=15 // pred_check
          %p225 = pneg %p120
        $region30: #{tpu_custom_call.1} parent=15 // pred_check_branch
          %227 = sbr.rel (%p225) target = $region32
        $region31: #{tpu_custom_call.1} parent=15 // pred_region
          %s228 = sand.u32 %s110, 1
          %s229 = scalar_lea.sflag [#allocation9], %s228
          %s230 = sand.u32 %s110, 1
          %s231 = smul.addr %s230, 8
          %s232 = scalar_lea.vmem [#allocation8], %s231
          %s234 = ssub.s32 128, 128
          %235 = vsyncadd %s229, %s234
          %s236 = smul.addr %s22, 128
          %s237 = scalar_lea.hbm %s3, %s236
          %s239 = sshll.u32 %s232, 4
          %s240 = int_to_ptr.vmem [resolvable:$true] %s239
          %242 = dma.hbm_to_vmem [thread:$0]  %s237, 128, %s240, %s229
        $region32: #{tpu_custom_call.1} parent=15 // pred_fallthru
          _
      $region16: #{tpu_custom_call.1} parent=5 // pred_fallthru
        _
      %p243 = scmp.le.s32.totalorder 1, %s22
      %p244 = scmp.lt.s32.totalorder %s22, 3
      %p245 = pnand %p243, %p244
      %p246 = pneg %p245
      // Predicated region
      $region33: #{tpu_custom_call.1} parent=5 // pred_check
        _
      $region34: #{tpu_custom_call.1} parent=5 // pred_check_branch
        %248 = sbr.rel (%p245) target = $region36
      $region35: #{tpu_custom_call.1} parent=5 // pred_region
        %s249 = ssub.s32 %s22, 1
        %s250 = sand.u32 %s35, 1
        %s251 = scalar_lea.sflag [#allocation3], %s250
        %s252 = sand.u32 %s35, 1
        %s253 = smul.addr %s252, 8
        %s254 = scalar_lea.vmem [#allocation2], %s253
        // Predicated region
        $region37: #{tpu_custom_call.1} parent=35 // pred_check
          %p255 = pneg %p48
        $region38: #{tpu_custom_call.1} parent=35 // pred_check_branch
          %257 = sbr.rel (%p255) target = $region40
        $region39: #{tpu_custom_call.1} parent=35 // pred_region
          %258 = dma.done %s251, 128
        $region40: #{tpu_custom_call.1} parent=35 // pred_fallthru
          _
        %s259 = sand.u32 %s27, 1
        %s260 = scalar_lea.sflag [#allocation6], %s259
        %s261 = sand.u32 %s61, 1
        %s262 = smul.addr %s261, 8
        %s263 = scalar_lea.vmem [#allocation5], %s262
        // Predicated region
        $region41: #{tpu_custom_call.1} parent=35 // pred_check
          %p264 = pneg %p74
        $region42: #{tpu_custom_call.1} parent=35 // pred_check_branch
          %266 = sbr.rel (%p264) target = $region44
        $region43: #{tpu_custom_call.1} parent=35 // pred_region
          %267 = dma.done %s260, 128
        $region44: #{tpu_custom_call.1} parent=35 // pred_fallthru
          _
        %s268 = sand.u32 %s27, 1
        %s269 = scalar_lea.sflag [#allocation6], %s268
        %s270 = sand.u32 %s87, 1
        %s271 = smul.addr %s270, 8
        %s272 = scalar_lea.vmem [#allocation7], %s271
        // Predicated region
        $region45: #{tpu_custom_call.1} parent=35 // pred_check
          %p273 = pneg %p100
        $region46: #{tpu_custom_call.1} parent=35 // pred_check_branch
          %275 = sbr.rel (%p273) target = $region48
        $region47: #{tpu_custom_call.1} parent=35 // pred_region
          %276 = dma.done %s269, 128
        $region48: #{tpu_custom_call.1} parent=35 // pred_fallthru
          _
        %s277 = sand.u32 %s113, 1
        %s278 = scalar_lea.sflag [#allocation9], %s277
        %s279 = sand.u32 %s113, 1
        %s280 = smul.addr %s279, 8
        %s281 = scalar_lea.vmem [#allocation8], %s280
        // Predicated region
        $region49: #{tpu_custom_call.1} parent=35 // pred_check
          %p282 = pneg %p126
        $region50: #{tpu_custom_call.1} parent=35 // pred_check_branch
          %284 = sbr.rel (%p282) target = $region52
        $region51: #{tpu_custom_call.1} parent=35 // pred_region
          %285 = dma.done %s278, 128
        $region52: #{tpu_custom_call.1} parent=35 // pred_fallthru
          _
        %s286 = sand.u32 %s35, 1
        %s287 = scalar_lea.sflag [#allocation3], %s286
        %s288 = sand.u32 %s35, 1
        %s289 = smul.addr %s288, 8
        %s290 = scalar_lea.vmem [#allocation2], %s289
        %p291 = pneg %p48
        %p292 = pneg %p45
        %s293 = sand.u32 %s27, 1
        %s294 = scalar_lea.sflag [#allocation6], %s293
        %s295 = sand.u32 %s61, 1
        %s296 = smul.addr %s295, 8
        %s297 = scalar_lea.vmem [#allocation5], %s296
        %p298 = pneg %p74
        %p299 = pneg %p71
        %s300 = sand.u32 %s27, 1
        %s301 = scalar_lea.sflag [#allocation6], %s300
        %s302 = sand.u32 %s87, 1
        %s303 = smul.addr %s302, 8
        %s304 = scalar_lea.vmem [#allocation7], %s303
        %p305 = pneg %p100
        %p306 = pneg %p97
        %s307 = sand.u32 %s113, 1
        %s308 = scalar_lea.sflag [#allocation9], %s307
        %s309 = sand.u32 %s113, 1
        %s310 = smul.addr %s309, 8
        %s311 = scalar_lea.vmem [#allocation8], %s310
        %p312 = pneg %p126
        %p313 = pneg %p123
        %p314 = pneg %p152
        %p315 = pneg %p149
        %s316 = sand.u32 %s139, 1
        %s317 = scalar_lea.sflag [#allocation4], %s316
        %s318 = sand.u32 %s139, 1
        %s319 = smul.addr %s318, 8
        %s320 = scalar_lea.vmem [#allocation10], %s319
        %v321 = vld [vmem:[%s254] sm:$0xff]
        %v322 = vld [vmem:[%s263] sm:$0xff]
        %v323 = vld [vmem:[%s272] sm:$0xff]
        %v324 = vld [vmem:[%s281] sm:$0xff]
        %v325 = vand.u32 2147483647, %v323
        %vm326 = vcmp.le.f32.partialorder %v325, 0.7853982
        %vm327 = vcmp.lt.s32.totalorder %v323, 0
        %v328 = vand.u32 %v323, 2139095040
        %v329 = vshrl.u32 %v328, 23
        %v330 = vsub.s32 %v329, 127
        %v331 = vand.u32 2147483647, %v323
        %v332 = vand.u32 %v331, 8388607
        %v333 = vor.u32 %v332, 8388608
        %v334 = vsub.s32 0, %v333
        %v335 = vadd.s32 %v330, 1
        %vm336 = vcmp.gt.s32.totalorder %v335, 0
        %v337 = vsel %vm336, %v335, 0
        %v338 = vshrl.u32 %v337, 5
        %v339 = vand.u32 %v337, 31
        %v340 = vsub.s32 32, %v339
        %v341 = vshrl.u32 683565275, %v340
        %v342 = vshll.u32 683565275, %v339
        %v343 = vshrl.u32 2475754826, %v340
        %v344 = vor.u32 %v342, %v343
        %v345 = vshll.u32 2475754826, %v339
        %v346 = vshrl.u32 2131351028, %v340
        %v347 = vor.u32 %v345, %v346
        %v348 = vshll.u32 2131351028, %v339
        %v349 = vshrl.u32 2102212464, %v340
        %v350 = vor.u32 %v348, %v349
        %v351 = vshll.u32 2102212464, %v339
        %v352 = vshrl.u32 920167782, %v340
        %v353 = vor.u32 %v351, %v352
        %v354 = vshll.u32 920167782, %v339
        %v355 = vshrl.u32 1326507024, %v340
        %v356 = vor.u32 %v354, %v355
        %vm357 = vcmp.lt.s32.totalorder %v338, 1
        %vm358 = vcmp.lt.s32.totalorder %v338, 2
        %vm359 = vcmp.lt.s32.totalorder %v338, 3
        %vm360 = vcmp.lt.s32.totalorder %v338, 4
        %v361 = vsel %vm357, %v341, %v344
        %v362 = vsel %vm360, %v350, 2102212464
        %v363 = vsel %vm359, %v347, %v362
        %v364 = vsel %vm358, %v361, %v363
        %v365 = vsel %vm357, %v344, %v347
        %v366 = vsel %vm360, %v353, 920167782
        %v367 = vsel %vm359, %v350, %v366
        %v368 = vsel %vm358, %v365, %v367
        %v369 = vsel %vm357, %v347, %v350
        %v370 = vsel %vm360, %v356, 1326507024
        %v371 = vsel %vm359, %v353, %v370
        %v372 = vsel %vm358, %v369, %v371
        %v373 = vshll.u32 %v333, 8
        %v374 = vmul.u32.u64.compose %v373, %v372
        %v375 = vextract.low.u32 %v374
        %v376 = vextract.high.u32 %v374
        %v377 = vmul.u32.u64.compose %v373, %v368
        %v378 = vextract.low.u32 %v377
        %v379 = vextract.high.u32 %v377
        %v380 = vmul.u32 %v373, %v364
        %v381 = vadd.s32 %v376, %v378
        %vm382 = vc.u32 %v376, %v378
        %v383 = vadd.s32 %v379, 1
        %v384 = vsel %vm382, %v383, %v379
        %v385 = vadd.s32 %v380, %v384
        %v386 = vadd.s32 %v385, 536870912
        %v387 = vshrl.u32 %v386, 30
        %v388 = vshll.u32 %v387, 30
        %v389 = vsub.s32 %v385, %v388
        %vm390 = vcmp.lt.s32.totalorder %v389, 0
        %v391 = vsub.s32 0, %v389
        %v392 = vsel %vm390, %v391, %v389
        %v393 = vclz %v392
        %v394 = vsub.s32 %v393, 2
        %vm395 = vcmp.gt.s32.totalorder 0, %v394
        %v396 = vsel %vm395, 0, %v394
        %v397 = vsub.s32 32, %v396
        %v398 = vshll.u32 %v389, %v396
        %v399 = vshrl.u32 %v381, %v397
        %v400 = vor.u32 %v398, %v399
        %v401 = vsub.s32 4294967266, %v396
        %v402 = vadd.s32 %v401, 127
        %v403 = vshll.u32 %v402, 23
        %v404 = vor.u32 4788187, %v403
        %v405 = vand.u32 2147483647, %v404
        %v407 = vcvt.s32.f32 %v400
        %v408 = vmul.f32 %v407, %v405
        %v409 = vxor.u32 %v408, 2147483648
        %v410 = vsel %vm327, %v409, %v408
        %v411 = vsub.s32 4, %v387
        %v412 = vsel %vm327, %v411, %v387
        %v413 = vsel %vm326, %v323, %v410
        %v414 = vsel %vm326, 0, %v412
        %v415 = vcosq.f32.pop %v413
        %v416 = vsinq.f32.pop %v413
        %vm417 = vweird.f32 %v323
        %v418 = vand.u32 %v414, 3
        %vm419 = vcmp.lt.s32.totalorder %v418, 2
        %vm420 = vcmp.eq.s32.totalorder %v418, 0
        %v421 = vxor.u32 %v416, 2147483648
        %v422 = vsel %vm420, %v415, %v421
        %vm423 = vcmp.eq.s32.totalorder %v418, 2
        %v424 = vxor.u32 %v415, 2147483648
        %v425 = vsel %vm423, %v424, %v416
        %v426 = vsel %vm419, %v422, %v425
        %v427 = vsel %vm417, nan, %v426
        %v428 = vsub.f32 %v321, %v427
        %v429 = vand.u32 2147483647, %v428
        %v430 = vand.u32 2147483647, %v323
        %vm431 = vcmp.le.f32.partialorder %v430, 0.7853982
        %vm432 = vcmp.lt.s32.totalorder %v323, 0
        %v433 = vand.u32 %v323, 2139095040
        %v434 = vshrl.u32 %v433, 23
        %v435 = vsub.s32 %v434, 127
        %v436 = vand.u32 2147483647, %v323
        %v437 = vand.u32 %v436, 8388607
        %v438 = vor.u32 %v437, 8388608
        %v439 = vsub.s32 0, %v438
        %v440 = vadd.s32 %v435, 1
        %vm441 = vcmp.gt.s32.totalorder %v440, 0
        %v442 = vsel %vm441, %v440, 0
        %v443 = vshrl.u32 %v442, 5
        %v444 = vand.u32 %v442, 31
        %v445 = vsub.s32 32, %v444
        %v446 = vshrl.u32 683565275, %v445
        %v447 = vshll.u32 683565275, %v444
        %v448 = vshrl.u32 2475754826, %v445
        %v449 = vor.u32 %v447, %v448
        %v450 = vshll.u32 2475754826, %v444
        %v451 = vshrl.u32 2131351028, %v445
        %v452 = vor.u32 %v450, %v451
        %v453 = vshll.u32 2131351028, %v444
        %v454 = vshrl.u32 2102212464, %v445
        %v455 = vor.u32 %v453, %v454
        %v456 = vshll.u32 2102212464, %v444
        %v457 = vshrl.u32 920167782, %v445
        %v458 = vor.u32 %v456, %v457
        %v459 = vshll.u32 920167782, %v444
        %v460 = vshrl.u32 1326507024, %v445
        %v461 = vor.u32 %v459, %v460
        %vm462 = vcmp.lt.s32.totalorder %v443, 1
        %vm463 = vcmp.lt.s32.totalorder %v443, 2
        %vm464 = vcmp.lt.s32.totalorder %v443, 3
        %vm465 = vcmp.lt.s32.totalorder %v443, 4
        %v466 = vsel %vm462, %v446, %v449
        %v467 = vsel %vm465, %v455, 2102212464
        %v468 = vsel %vm464, %v452, %v467
        %v469 = vsel %vm463, %v466, %v468
        %v470 = vsel %vm462, %v449, %v452
        %v471 = vsel %vm465, %v458, 920167782
        %v472 = vsel %vm464, %v455, %v471
        %v473 = vsel %vm463, %v470, %v472
        %v474 = vsel %vm462, %v452, %v455
        %v475 = vsel %vm465, %v461, 1326507024
        %v476 = vsel %vm464, %v458, %v475
        %v477 = vsel %vm463, %v474, %v476
        %v478 = vshll.u32 %v438, 8
        %v479 = vmul.u32.u64.compose %v478, %v477
        %v480 = vextract.low.u32 %v479
        %v481 = vextract.high.u32 %v479
        %v482 = vmul.u32.u64.compose %v478, %v473
        %v483 = vextract.low.u32 %v482
        %v484 = vextract.high.u32 %v482
        %v485 = vmul.u32 %v478, %v469
        %v486 = vadd.s32 %v481, %v483
        %vm487 = vc.u32 %v481, %v483
        %v488 = vadd.s32 %v484, 1
        %v489 = vsel %vm487, %v488, %v484
        %v490 = vadd.s32 %v485, %v489
        %v491 = vadd.s32 %v490, 536870912
        %v492 = vshrl.u32 %v491, 30
        %v493 = vshll.u32 %v492, 30
        %v494 = vsub.s32 %v490, %v493
        %vm495 = vcmp.lt.s32.totalorder %v494, 0
        %v496 = vsub.s32 0, %v494
        %v497 = vsel %vm495, %v496, %v494
        %v498 = vclz %v497
        %v499 = vsub.s32 %v498, 2
        %vm500 = vcmp.gt.s32.totalorder 0, %v499
        %v501 = vsel %vm500, 0, %v499
        %v502 = vsub.s32 32, %v501
        %v503 = vshll.u32 %v494, %v501
        %v504 = vshrl.u32 %v486, %v502
        %v505 = vor.u32 %v503, %v504
        %v506 = vsub.s32 4294967266, %v501
        %v507 = vadd.s32 %v506, 127
        %v508 = vshll.u32 %v507, 23
        %v509 = vor.u32 4788187, %v508
        %v510 = vand.u32 2147483647, %v509
        %v512 = vcvt.s32.f32 %v505
        %v513 = vmul.f32 %v512, %v510
        %v514 = vxor.u32 %v513, 2147483648
        %v515 = vsel %vm432, %v514, %v513
        %v516 = vsub.s32 4, %v492
        %v517 = vsel %vm432, %v516, %v492
        %v518 = vsel %vm431, %v323, %v515
        %v519 = vsel %vm431, 0, %v517
        %v520 = vcosq.f32.pop %v518
        %v521 = vsinq.f32.pop %v518
        %vm522 = vweird.f32 %v323
        %v523 = vadd.s32 %v519, 3
        %v524 = vand.u32 %v523, 3
        %vm525 = vcmp.lt.s32.totalorder %v524, 2
        %vm526 = vcmp.eq.s32.totalorder %v524, 0
        %v527 = vxor.u32 %v521, 2147483648
        %v528 = vsel %vm526, %v520, %v527
        %vm529 = vcmp.eq.s32.totalorder %v524, 2
        %v530 = vxor.u32 %v520, 2147483648
        %v531 = vsel %vm529, %v530, %v521
        %v532 = vsel %vm525, %v528, %v531
        %v533 = vsel %vm522, nan, %v532
        %v534 = vsub.f32 %v322, %v533
        %v535 = vand.u32 2147483647, %v534
        %v536 = vadd.f32 %v429, %v535
        %v537 = vmul.f32 %v324, %v536
        %v538 = vadd.f32 %v537, 0.0
        %539 = vst [vmem:[%s320] sm:$0xff] %v538
        %s540 = sand.u32 %s139, 1
        %s541 = scalar_lea.sflag [#allocation4], %s540
        %s542 = sand.u32 %s139, 1
        %s543 = smul.addr %s542, 8
        %s544 = scalar_lea.vmem [#allocation10], %s543
        // Predicated region
        $region53: #{tpu_custom_call.1} parent=35 // pred_check
          %p545 = pneg %p149
        $region54: #{tpu_custom_call.1} parent=35 // pred_check_branch
          %547 = sbr.rel (%p545) target = $region56
        $region55: #{tpu_custom_call.1} parent=35 // pred_region
          %s549 = ssub.s32 128, 128
          %550 = vsyncadd %s541, %s549
          %s551 = smul.addr %s27, 128
          %s552 = scalar_lea.hbm %s4, %s551
          %s554 = sshll.u32 %s544, 4
          %s555 = int_to_ptr.vmem [resolvable:$true] %s554
          %557 = dma.vmem_to_hbm [thread:$0]  %s555, 128, %s552, %s541
        $region56: #{tpu_custom_call.1} parent=35 // pred_fallthru
          _
      $region36: #{tpu_custom_call.1} parent=5 // pred_fallthru
        _
      %p558 = scmp.le.s32.totalorder 2, %s22
      // Predicated region
      $region57: #{tpu_custom_call.1} parent=5 // pred_check
        %p559 = pneg %p558
      $region58: #{tpu_custom_call.1} parent=5 // pred_check_branch
        %561 = sbr.rel (%p559) target = $region60
      $region59: #{tpu_custom_call.1} parent=5 // pred_region
        %s562 = ssub.s32 %s22, 2
        // Predicated region
        $region61: #{tpu_custom_call.1} parent=59 // pred_check
          %p563 = pneg %p155
        $region62: #{tpu_custom_call.1} parent=59 // pred_check_branch
          %565 = sbr.rel (%p563) target = $region64
        $region63: #{tpu_custom_call.1} parent=59 // pred_region
          %s566 = sand.u32 %s140, 1
          %s567 = scalar_lea.sflag [#allocation4], %s566
          %s568 = sand.u32 %s140, 1
          %s569 = smul.addr %s568, 8
          %s570 = scalar_lea.vmem [#allocation10], %s569
          %571 = dma.done %s567, 128
        $region64: #{tpu_custom_call.1} parent=59 // pred_fallthru
          _
      $region60: #{tpu_custom_call.1} parent=5 // pred_fallthru
        _
    $region6: #{tpu_custom_call.1} parent=1 // loop_footer
      %s26 = sadd.s32 1, %s22
    $region7: #{tpu_custom_call.1} parent=1 // loop_footer_branch
      %21 = sbr.rel target = $region3
    $region8: #{tpu_custom_call.1} parent=1 // loop_exit
      _
    %572 = vsyncpa [#allocation3], 1
    %s573 = scalar_lea.sflag [#allocation3], 1
    %574 = vsyncpa %s573, 1
    %575 = vsyncpa [#allocation6], 1
    %s576 = scalar_lea.sflag [#allocation6], 1
    %577 = vsyncpa %s576, 1
    %578 = vsyncpa [#allocation9], 1
    %s579 = scalar_lea.sflag [#allocation9], 1
    %580 = vsyncpa %s579, 1
    %581 = vsyncpa [#allocation4], 1
    %s582 = scalar_lea.sflag [#allocation4], 1
    %583 = vsyncpa %s582, 1

</llo_original>
